<compile_context>
chip_gen: v5e
topology: v5e:2x2
jax: 0.10.0
libtpu: 0.0.40
codegen_flags: <defaults>
</compile_context>

<pallas_src>
import jax
import jax.numpy as jnp
from jax.experimental import pallas as pl
from jax.experimental.pallas import tpu as pltpu

_LANE = 128      # lane width (last dim)
_SUBLANE_BF16 = 16  # second-minor alignment that keeps bf16 reshapes layout-trivial


def _round_up(x, m):
    return (x + m - 1) // m * m


def _vmem_capacity_bytes():
    """Per-core VMEM capacity; conservative 64 MiB (v7x) fallback."""
    try:
        info = pltpu.get_tpu_info()
        cap = getattr(info, "vmem_capacity_bytes", None)
        if cap:
            return int(cap)
    except Exception:
        pass
    return 64 * 1024 * 1024


def _vmem_limit_bytes():
    # Leave headroom for Mosaic internal scratch; cap at 96 MiB on 128 MiB parts.
    return min(_vmem_capacity_bytes() * 3 // 4, 96 * 1024 * 1024)


def _tile_vmem_bytes(tm, tn, tk):
    """Estimated double-buffered working set for one grid step (bf16 in, f32 out)."""
    x_bytes = 2 * (2 * tm * tk) * 2        # bf16 x planes, double buffered
    w_bytes = 2 * (2 * tk * tn) * 2        # bf16 w planes, double buffered
    b_bytes = 2 * (2 * 1 * tn) * 4         # f32 bias planes
    o_bytes = 2 * (2 * tm * tn) * 4        # f32 output planes, double buffered
    acc_bytes = (2 * tm * tn) * 4          # f32 accumulator scratch
    tmp_bytes = 2 * (2 * tm * tn) * 4      # pr / pi f32 temporaries
    return x_bytes + w_bytes + b_bytes + o_bytes + acc_bytes + tmp_bytes


def choose_tiles(B, in_features, out_features, tm=None, tn=None, tk=None):
    """Pick (tm, tn, tk) and padded dims, generation-aware via the VMEM budget."""
    budget = int(_vmem_limit_bytes() * 0.85)

    m_full = _round_up(B, _SUBLANE_BF16)
    k_full = _round_up(in_features, _LANE)
    n_full = _round_up(out_features, _LANE)

    tm = _round_up(min(tm or 256, m_full), _SUBLANE_BF16)
    tk = _round_up(min(tk or 2048, k_full), _LANE)
    tn = _round_up(min(tn or 1024, n_full), _LANE)

    # v7x has 2 TensorCores fed by sharding the "parallel" grid axes: when the
    # M axis collapses to a single block, keep >= 2 blocks along N if possible.
    m_blocks = _round_up(B, tm) // tm
    if m_blocks == 1 and n_full >= 2 * _LANE:
        tn = min(tn, max(_LANE, (n_full // 2) // _LANE * _LANE))

    # Shrink K, then N, then M until the double-buffered working set fits VMEM.
    while _tile_vmem_bytes(tm, tn, tk) > budget and tk > _LANE:
        tk = max(_LANE, tk // 2)
    while _tile_vmem_bytes(tm, tn, tk) > budget and tn > _LANE:
        tn = max(_LANE, tn // 2)
    while _tile_vmem_bytes(tm, tn, tk) > budget and tm > _SUBLANE_BF16:
        tm = max(_SUBLANE_BF16, tm // 2)

    Mp = _round_up(B, tm)
    Kp = _round_up(in_features, tk)
    Np = _round_up(out_features, tn)
    return tm, tn, tk, Mp, Kp, Np


def pack_weights(wr, wi, br, bi, Kp, Np):
    """Pre-transpose / pad / plane-stack the weights (call once, reuse per forward).

    Returns:
      w_slab: (2, Kp, Np) bf16   plane 0 = Wr^T, plane 1 = Wi^T
      b_slab: (2, 1,  Np) f32    plane 0 = br - bi, plane 1 = br + bi
    """
    out_features, in_features = wr.shape
    w_slab = jnp.zeros((2, Kp, Np), jnp.bfloat16)
    w_slab = w_slab.at[0, :in_features, :out_features].set(wr.T.astype(jnp.bfloat16))
    w_slab = w_slab.at[1, :in_features, :out_features].set(wi.T.astype(jnp.bfloat16))

    b_slab = jnp.zeros((2, 1, Np), jnp.float32)
    b_slab = b_slab.at[0, 0, :out_features].set((br - bi).astype(jnp.float32))
    b_slab = b_slab.at[1, 0, :out_features].set((br + bi).astype(jnp.float32))
    return w_slab, b_slab


def complex_linear_kernel(x_ref, w_ref, b_ref, o_ref, acc_ref):
    """One (i, j, k) grid step of the tiled complex matmul.

    x_ref  : (2, tm, tk) bf16  plane 0 = Re(x) tile, plane 1 = Im(x) tile
    w_ref  : (2, tk, tn) bf16  plane 0 = Wr^T tile,  plane 1 = Wi^T tile
    b_ref  : (2, 1,  tn) f32   plane 0 = (br - bi),  plane 1 = (br + bi)
    o_ref  : (2, tm, tn) f32   plane 0 = Re(out),    plane 1 = Im(out)
    acc_ref: (2, tm, tn) f32   K-resident accumulator scratch
    """
    tm = x_ref.shape[1]
    tk = x_ref.shape[2]

    @pl.when(pl.program_id(2) == 0)
    def _init():
        # Seed the accumulator with the pre-combined bias planes so the
        # epilogue is a pure cast+store (no extra full-tile VPU add).
        acc_ref[...] = jnp.broadcast_to(b_ref[...], acc_ref.shape)

    # Stack [xr; xi] along rows (layout-trivial: tm is a multiple of 16) so each
    # weight tile is pushed through the MXU exactly once -> 2 bf16 dots / step.
    lhs = x_ref[...].reshape(2 * tm, tk)                                 # [xr; xi]
    pr = jnp.dot(lhs, w_ref[0], preferred_element_type=jnp.float32)      # [xr@Wr; xi@Wr]
    pi = jnp.dot(lhs, w_ref[1], preferred_element_type=jnp.float32)      # [xr@Wi; xi@Wi]

    # real += xr@Wr - xi@Wi ; imag += xi@Wr + xr@Wi   (cheap VPU adds)
    acc_ref[0] += pr[:tm] - pi[tm:]
    acc_ref[1] += pr[tm:] + pi[:tm]

    @pl.when(pl.program_id(2) == pl.num_programs(2) - 1)
    def _finalize():
        o_ref[...] = acc_ref[...].astype(o_ref.dtype)


def complex_linear_packed(x, w_slab, b_slab, out_features, *, tm, tn, tk):
    """Hot path: x complex64 (B, in_features) with pre-packed weight/bias slabs."""
    B, in_features = x.shape
    _, Kp, Np = w_slab.shape
    Mp = _round_up(B, tm)
    assert Kp % tk == 0 and Np % tn == 0 and Mp % tm == 0

    # Split + cast in one fused pass; pad only when actually needed.
    x_planes = jnp.stack(
        [jnp.real(x).astype(jnp.bfloat16), jnp.imag(x).astype(jnp.bfloat16)], axis=0)
    if Mp != B or Kp != in_features:
        x_planes = jnp.pad(x_planes, ((0, 0), (0, Mp - B), (0, Kp - in_features)))

    grid = (Mp // tm, Np // tn, Kp // tk)

    # 4 real matmuls worth of FLOPs; bf16 bytes for x / w, f32 for bias / output.
    flops = 8 * Mp * Kp * Np
    bytes_accessed = 2 * (2 * Mp * Kp + 2 * Kp * Np) + 4 * (2 * Np + 2 * Mp * Np)

    out_slab = pl.pallas_call(
        complex_linear_kernel,
        out_shape=jax.ShapeDtypeStruct((2, Mp, Np), jnp.float32),
        grid_spec=pltpu.PrefetchScalarGridSpec(
            num_scalar_prefetch=0,
            grid=grid,
            in_specs=[
                pl.BlockSpec((2, tm, tk), lambda i, j, k: (0, i, k)),  # x planes
                pl.BlockSpec((2, tk, tn), lambda i, j, k: (0, k, j)),  # w planes
                pl.BlockSpec((2, 1, tn), lambda i, j, k: (0, 0, j)),   # bias planes
            ],
            out_specs=pl.BlockSpec((2, tm, tn), lambda i, j, k: (0, i, j)),
            scratch_shapes=[pltpu.VMEM((2, tm, tn), jnp.float32)],
        ),
        compiler_params=pltpu.CompilerParams(
            dimension_semantics=("parallel", "parallel", "arbitrary"),
            vmem_limit_bytes=_vmem_limit_bytes(),
        ),
        cost_estimate=pl.CostEstimate(
            flops=flops, transcendentals=0, bytes_accessed=bytes_accessed),
    )(x_planes, w_slab, b_slab)

    real = out_slab[0, :B, :out_features]
    imag = out_slab[1, :B, :out_features]
    return jax.lax.complex(real, imag)


def complex_linear(x, wr, wi, br, bi, *, tm=None, tn=None, tk=None):
    """Convenience wrapper (packs weights per call).  In a real model, call
    choose_tiles + pack_weights once and reuse complex_linear_packed."""
    B, in_features = x.shape
    out_features = wr.shape[0]
    tm, tn, tk, _, Kp, Np = choose_tiles(B, in_features, out_features, tm, tn, tk)
    w_slab, b_slab = pack_weights(wr, wi, br, bi, Kp, Np)
    return complex_linear_packed(x, w_slab, b_slab, out_features, tm=tm, tn=tn, tk=tk)


def init_params(key, in_features, out_features):
    """Deterministic init matching ComplexLinear.__init__ shapes.
    kaiming_normal_(mode='fan_out', nonlinearity='relu') -> std = sqrt(2/out)."""
    k1, k2, k3, k4 = jax.random.split(key, 4)
    std = (2.0 / out_features) ** 0.5
    wr = std * jax.random.normal(k1, (out_features, in_features), jnp.float32)
    wi = std * jax.random.normal(k2, (out_features, in_features), jnp.float32)
    bound = 1.0 / (in_features ** 0.5)  # nn.Linear default bias init
    br = jax.random.uniform(k3, (out_features,), jnp.float32, -bound, bound)
    bi = jax.random.uniform(k4, (out_features,), jnp.float32, -bound, bound)
    return wr, wi, br, bi


def _reference(x, wr, wi, br, bi, quantize_bf16):
    """Pure-JAX reference.  With quantize_bf16=True the inputs/weights are
    rounded to bf16 first, matching the kernel's deliberate bf16 MXU feed."""
    xr, xi = jnp.real(x), jnp.imag(x)
    if quantize_bf16:
        q = lambda a: a.astype(jnp.bfloat16).astype(jnp.float32)
        xr, xi, wr, wi = q(xr), q(xi), q(wr), q(wi)
    real = xr @ wr.T + br - (xi @ wi.T + bi)
    imag = xi @ wr.T + br + (xr @ wi.T + bi)
    return jax.lax.complex(real, imag)


if __name__ == "__main__":
    key = jax.random.PRNGKey(0)
    kx_r, kx_i, kp = jax.random.split(key, 3)

    # Test 1: small shapes, pre-packed weights (hot-path API), single grid step.
    B, in_features, out_features = 8, 32, 16
    x_real = jax.random.normal(kx_r, (B, in_features), jnp.float32)
    x_imag = jax.random.normal(kx_i, (B, in_features), jnp.float32)
    x = jax.lax.complex(x_real, x_imag)            # (8, 32) complex64
    wr, wi, br, bi = init_params(kp, in_features, out_features)

    tm, tn, tk, _, Kp, Np = choose_tiles(B, in_features, out_features)
    w_slab, b_slab = pack_weights(wr, wi, br, bi, Kp, Np)   # packed once, reused
    out = jax.block_until_ready(
        complex_linear_packed(x, w_slab, b_slab, out_features, tm=tm, tn=tn, tk=tk))

    ref_q = _reference(x, wr, wi, br, bi, quantize_bf16=True)
    ref_f = _reference(x, wr, wi, br, bi, quantize_bf16=False)
    assert out.shape == (B, out_features) and out.dtype == jnp.complex64
    # Tight check vs bf16-quantized reference (only accumulation order differs).
    assert jnp.allclose(out, ref_q, atol=1e-3, rtol=1e-3)
    # Loose sanity check vs full-precision reference (documents the bf16 choice).
    assert jnp.allclose(out, ref_f, atol=1e-1, rtol=1e-1)

    # Test 2: ragged shapes + small explicit tiles to exercise padding and a
    # multi-tile (M, N, K) grid with the bias-seeded K accumulator / epilogue.
    B2, in2, out2 = 20, 300, 200
    k1, k2, k3 = jax.random.split(jax.random.PRNGKey(1), 3)
    x2 = jax.lax.complex(jax.random.normal(k1, (B2, in2), jnp.float32),
                         jax.random.normal(k2, (B2, in2), jnp.float32))
    wr2, wi2, br2, bi2 = init_params(k3, in2, out2)
    out2v = jax.block_until_ready(
        complex_linear(x2, wr2, wi2, br2, bi2, tm=16, tn=128, tk=128))
    ref2_q = _reference(x2, wr2, wi2, br2, bi2, quantize_bf16=True)
    ref2_f = _reference(x2, wr2, wi2, br2, bi2, quantize_bf16=False)
    assert out2v.shape == (B2, out2) and out2v.dtype == jnp.complex64
    assert jnp.allclose(out2v, ref2_q, atol=1e-3, rtol=1e-3)
    assert jnp.allclose(out2v, ref2_f, atol=1e-1, rtol=1e-1)

    print("KERNEL_OK")
</pallas_src>

<mosaic_0001>
module attributes {stable_mosaic.version = 11 : i64} {
  func.func @complex_linear_kernel(%arg0: i32, %arg1: i32, %arg2: i32, %arg3: memref<2x16x128xbf16, #tpu.memory_space<vmem>>, %arg4: memref<2x128x128xbf16, #tpu.memory_space<vmem>>, %arg5: memref<2x1x128xf32, #tpu.memory_space<vmem>>, %arg6: memref<2x16x128xf32, #tpu.memory_space<vmem>>, %arg7: memref<2x16x128xf32, #tpu.memory_space<vmem>>) attributes {dimension_semantics = [#tpu.dimension_semantics<parallel>, #tpu.dimension_semantics<parallel>, #tpu.dimension_semantics<arbitrary>], iteration_bounds = array<i64: 1, 1, 1>, scalar_prefetch = 0 : i64, scratch_operands = 1 : i64, tpu.core_type = #tpu.core_type<tc>, window_params = [{transform_indices = @transform_0, window_bounds = array<i64: 2, 16, 128>}, {transform_indices = @transform_1, window_bounds = array<i64: 2, 128, 128>}, {transform_indices = @transform_2, window_bounds = array<i64: 2, 1, 128>}, {transform_indices = @transform_3, window_bounds = array<i64: 2, 16, 128>}]} {
    %c0_i32 = arith.constant 0 : i32
    %0 = arith.cmpi eq, %arg2, %c0_i32 : i32
    %1 = arith.extui %0 : i1 to i32
    %c0_i32_0 = arith.constant 0 : i32
    %2 = arith.cmpi ne, %1, %c0_i32_0 : i32
    scf.if %2 {
      %c0_23 = arith.constant 0 : index
      %c0_24 = arith.constant 0 : index
      %c0_25 = arith.constant 0 : index
      %32 = vector.load %arg5[%c0_23, %c0_24, %c0_25] : memref<2x1x128xf32, #tpu.memory_space<vmem>>, vector<2x1x128xf32>
      %33 = vector.shape_cast %32 : vector<2x1x128xf32> to vector<2x1x128xf32>
      %34 = vector.broadcast %33 : vector<2x1x128xf32> to vector<2x16x128xf32>
      %c0_26 = arith.constant 0 : index
      %c0_27 = arith.constant 0 : index
      %c0_28 = arith.constant 0 : index
      %35 = vector.load %arg7[%c0_26, %c0_27, %c0_28] : memref<2x16x128xf32, #tpu.memory_space<vmem>>, vector<2x16x128xf32>
      tpu.vector_store %arg7[%c0_26, %c0_27, %c0_28], %34 {strides = array<i32>} : memref<2x16x128xf32, #tpu.memory_space<vmem>>, vector<2x16x128xf32>,
    } else {
    }
    %c0 = arith.constant 0 : index
    %c0_1 = arith.constant 0 : index
    %c0_2 = arith.constant 0 : index
    %3 = vector.load %arg3[%c0, %c0_1, %c0_2] : memref<2x16x128xbf16, #tpu.memory_space<vmem>>, vector<2x16x128xbf16>
    %4 = vector.shape_cast %3 : vector<2x16x128xbf16> to vector<32x128xbf16>
    %c0_3 = arith.constant 0 : index
    %c0_4 = arith.constant 0 : index
    %c0_5 = arith.constant 0 : index
    %5 = vector.load %arg4[%c0_3, %c0_4, %c0_5] : memref<2x128x128xbf16, #tpu.memory_space<vmem>>, vector<1x128x128xbf16>
    %6 = vector.shape_cast %5 : vector<1x128x128xbf16> to vector<128x128xbf16>
    %cst = arith.constant dense<0.000000e+00> : vector<32x128xf32>
    %7 = tpu.matmul %4, %6, %cst {dimension_numbers = #tpu.dot_dimension_numbers<[1], [0], [0], [1], [0, 0, 1, 1], [], []>} : vector<32x128xbf16>, vector<128x128xbf16>, vector<32x128xf32> -> vector<32x128xf32>
    %c1 = arith.constant 1 : index
    %c0_6 = arith.constant 0 : index
    %c0_7 = arith.constant 0 : index
    %8 = vector.load %arg4[%c1, %c0_6, %c0_7] : memref<2x128x128xbf16, #tpu.memory_space<vmem>>, vector<1x128x128xbf16>
    %9 = vector.shape_cast %8 : vector<1x128x128xbf16> to vector<128x128xbf16>
    %cst_8 = arith.constant dense<0.000000e+00> : vector<32x128xf32>
    %10 = tpu.matmul %4, %9, %cst_8 {dimension_numbers = #tpu.dot_dimension_numbers<[1], [0], [0], [1], [0, 0, 1, 1], [], []>} : vector<32x128xbf16>, vector<128x128xbf16>, vector<32x128xf32> -> vector<32x128xf32>
    %c0_9 = arith.constant 0 : index
    %c0_10 = arith.constant 0 : index
    %c0_11 = arith.constant 0 : index
    %11 = vector.load %arg7[%c0_9, %c0_10, %c0_11] : memref<2x16x128xf32, #tpu.memory_space<vmem>>, vector<1x16x128xf32>
    %12 = vector.shape_cast %11 : vector<1x16x128xf32> to vector<16x128xf32>
    %13 = vector.extract_strided_slice %7 {offsets = [0, 0], sizes = [16, 128], strides = [1, 1]} : vector<32x128xf32> to vector<16x128xf32>
    %14 = vector.extract_strided_slice %10 {offsets = [16, 0], sizes = [16, 128], strides = [1, 1]} : vector<32x128xf32> to vector<16x128xf32>
    %15 = arith.subf %13, %14 : vector<16x128xf32>
    %16 = arith.addf %12, %15 : vector<16x128xf32>
    %c0_12 = arith.constant 0 : index
    %c0_13 = arith.constant 0 : index
    %c0_14 = arith.constant 0 : index
    %17 = vector.load %arg7[%c0_12, %c0_13, %c0_14] : memref<2x16x128xf32, #tpu.memory_space<vmem>>, vector<1x16x128xf32>
    %18 = vector.shape_cast %17 : vector<1x16x128xf32> to vector<16x128xf32>
    %19 = vector.shape_cast %16 : vector<16x128xf32> to vector<1x16x128xf32>
    tpu.vector_store %arg7[%c0_12, %c0_13, %c0_14], %19 {strides = array<i32>} : memref<2x16x128xf32, #tpu.memory_space<vmem>>, vector<1x16x128xf32>,
    %c1_15 = arith.constant 1 : index
    %c0_16 = arith.constant 0 : index
    %c0_17 = arith.constant 0 : index
    %20 = vector.load %arg7[%c1_15, %c0_16, %c0_17] : memref<2x16x128xf32, #tpu.memory_space<vmem>>, vector<1x16x128xf32>
    %21 = vector.shape_cast %20 : vector<1x16x128xf32> to vector<16x128xf32>
    %22 = vector.extract_strided_slice %7 {offsets = [16, 0], sizes = [16, 128], strides = [1, 1]} : vector<32x128xf32> to vector<16x128xf32>
    %23 = vector.extract_strided_slice %10 {offsets = [0, 0], sizes = [16, 128], strides = [1, 1]} : vector<32x128xf32> to vector<16x128xf32>
    %24 = arith.addf %22, %23 : vector<16x128xf32>
    %25 = arith.addf %21, %24 : vector<16x128xf32>
    %c1_18 = arith.constant 1 : index
    %c0_19 = arith.constant 0 : index
    %c0_20 = arith.constant 0 : index
    %26 = vector.load %arg7[%c1_18, %c0_19, %c0_20] : memref<2x16x128xf32, #tpu.memory_space<vmem>>, vector<1x16x128xf32>
    %27 = vector.shape_cast %26 : vector<1x16x128xf32> to vector<16x128xf32>
    %28 = vector.shape_cast %25 : vector<16x128xf32> to vector<1x16x128xf32>
    tpu.vector_store %arg7[%c1_18, %c0_19, %c0_20], %28 {strides = array<i32>} : memref<2x16x128xf32, #tpu.memory_space<vmem>>, vector<1x16x128xf32>,
    %c0_i32_21 = arith.constant 0 : i32
    %29 = arith.cmpi eq, %arg2, %c0_i32_21 : i32
    %30 = arith.extui %29 : i1 to i32
    %c0_i32_22 = arith.constant 0 : i32
    %31 = arith.cmpi ne, %30, %c0_i32_22 : i32
    scf.if %31 {
      %c0_23 = arith.constant 0 : index
      %c0_24 = arith.constant 0 : index
      %c0_25 = arith.constant 0 : index
      %32 = vector.load %arg7[%c0_23, %c0_24, %c0_25] : memref<2x16x128xf32, #tpu.memory_space<vmem>>, vector<2x16x128xf32>
      %c0_26 = arith.constant 0 : index
      %c0_27 = arith.constant 0 : index
      %c0_28 = arith.constant 0 : index
      %33 = vector.load %arg6[%c0_26, %c0_27, %c0_28] : memref<2x16x128xf32, #tpu.memory_space<vmem>>, vector<2x16x128xf32>
      tpu.vector_store %arg6[%c0_26, %c0_27, %c0_28], %32 {strides = array<i32>} : memref<2x16x128xf32, #tpu.memory_space<vmem>>, vector<2x16x128xf32>,
    } else {
    }
    return
  }
  func.func @transform_0(%arg0: i32, %arg1: i32, %arg2: i32) -> (i32, i32, i32) {
    %c0_i32 = arith.constant 0 : i32
    %c0_i32_0 = arith.constant 0 : i32
    return %c0_i32, %arg0, %arg2 : i32, i32, i32
  }
  func.func @transform_1(%arg0: i32, %arg1: i32, %arg2: i32) -> (i32, i32, i32) {
    %c0_i32 = arith.constant 0 : i32
    %c0_i32_0 = arith.constant 0 : i32
    return %c0_i32, %arg2, %arg1 : i32, i32, i32
  }
  func.func @transform_2(%arg0: i32, %arg1: i32, %arg2: i32) -> (i32, i32, i32) {
    %c0_i32 = arith.constant 0 : i32
    %c0_i32_0 = arith.constant 0 : i32
    %c0_i32_1 = arith.constant 0 : i32
    return %c0_i32, %c0_i32_0, %arg1 : i32, i32, i32
  }
  func.func @transform_3(%arg0: i32, %arg1: i32, %arg2: i32) -> (i32, i32, i32) {
    %c0_i32 = arith.constant 0 : i32
    %c0_i32_0 = arith.constant 0 : i32
    return %c0_i32, %arg0, %arg1 : i32, i32, i32
  }
}

</mosaic_0001>

<llo_original>
// kernel: tpu_custom_call.1
$region0: #{tpu_custom_call.1}
  #allocation0 [shape = 'u32[]', space=smem, size = 0x4, offset = 0x4, fixed_abs, tag = 'smem constant byte address 0x4 - core index']
  #allocation1 [shape = 'u32[72,128]{1,0:T(1,128)}', space=vmem, size = 0x9000, scoped, tag = 'internal scratch']
  #allocation2 [shape = 'f32[2,16,128]{2,1,0:T(8,128)}', space=vmem, size = 0x4000, scoped, tag = 'scratch operand']
  %s0 = inlined_call_operand.hbm [shape: bf16[2,16,128], index: 0, kind: input, shape index: {}]
  %s1 = inlined_call_operand.hbm [shape: bf16[2,128,128], index: 1, kind: input, shape index: {}]
  %s2 = inlined_call_operand.hbm [shape: f32[2,1,128], index: 2, kind: input, shape index: {}]
  %s3 = inlined_call_operand.hbm [shape: f32[2,16,128], index: 3, kind: output, shape index: {}]
  %s4 = sld [smem:[#allocation0]]
  $region42: #{tpu_custom_call.1} parent=0
    _
  %s6 = ssub.s32 1, %s4
  %s7 = scalar_select 0, %s6, %s4
  $region1: #{tpu_custom_call.1} parent=0
    #allocation3 [shape = 'u8[8192]{0}', space=vmem, size = 0x2000, scoped, tag = 'input window, operand 0, single buffered']
    #allocation4 [shape = 's32[1]{0}', space=sflag, size = 0x4, scoped, tag = 'scoped memory for tpu_custom_call.1']
    #allocation5 [shape = 's32[1]{0}', space=sflag, size = 0x4, scoped, tag = 'scoped memory for tpu_custom_call.1']
    #allocation6 [shape = 'u8[65536]{0}', space=vmem, size = 0x10000, scoped, tag = 'input window, operand 1, single buffered']
    #allocation7 [shape = 's32[1]{0}', space=sflag, size = 0x4, scoped, tag = 'scoped memory for tpu_custom_call.1']
    #allocation8 [shape = 'u8[1024]{0}', space=vmem, size = 0x400, scoped, tag = 'input window, operand 2, single buffered']
    #allocation9 [shape = 'u8[16384]{0}', space=vmem, size = 0x4000, scoped, tag = 'output window, operand 0, single buffered']
    %8 = vsyncpa [#allocation4], 0
    %9 = vsyncpa [#allocation7], 0
    %10 = vsyncpa [#allocation5], 0
    // Predicated region
    $region2: #{tpu_custom_call.1} parent=1 // pred_check
      _
    $region3: #{tpu_custom_call.1} parent=1 // pred_check_branch
      %12 = sbr.rel (0) target = $region5
    $region4: #{tpu_custom_call.1} parent=1 // pred_region
      %14 = vsyncadd [#allocation4], 0
      %s15 = sshll.u32 %s0, 4
      %s16 = int_to_ptr.hbm [resolvable:$true] %s15
      %s17 = sshll.u32 [#allocation3], 4
      %s18 = int_to_ptr.vmem [resolvable:$true] %s17
      %23 = dma.hbm_to_vmem [thread:$0]  %s16, 256, %s18, [#allocation4], 64, 64, 4
    $region5: #{tpu_custom_call.1} parent=1 // pred_fallthru
      _
    // Predicated region
    $region6: #{tpu_custom_call.1} parent=1 // pred_check
      _
    $region7: #{tpu_custom_call.1} parent=1 // pred_check_branch
      %25 = sbr.rel (0) target = $region9
    $region8: #{tpu_custom_call.1} parent=1 // pred_region
      %27 = vsyncadd [#allocation7], 0
      %s28 = sshll.u32 %s1, 4
      %s29 = int_to_ptr.hbm [resolvable:$true] %s28
      %s30 = sshll.u32 [#allocation6], 4
      %s31 = int_to_ptr.vmem [resolvable:$true] %s30
      %36 = dma.hbm_to_vmem [thread:$0]  %s29, 2048, %s31, [#allocation7], 64, 64, 4
    $region9: #{tpu_custom_call.1} parent=1 // pred_fallthru
      _
    // Predicated region
    $region10: #{tpu_custom_call.1} parent=1 // pred_check
      _
    $region11: #{tpu_custom_call.1} parent=1 // pred_check_branch
      %38 = sbr.rel (0) target = $region13
    $region12: #{tpu_custom_call.1} parent=1 // pred_region
      %40 = vsyncadd [#allocation7], 0
      %s41 = sshll.u32 %s2, 4
      %s42 = int_to_ptr.hbm [resolvable:$true] %s41
      %s43 = sshll.u32 [#allocation8], 4
      %s44 = int_to_ptr.vmem [resolvable:$true] %s43
      %49 = dma.hbm_to_vmem [thread:$0]  %s42, 32, %s44, [#allocation7], 16, 16, 1
    $region13: #{tpu_custom_call.1} parent=1 // pred_fallthru
      _
    // Predicated region
    $region14: #{tpu_custom_call.1} parent=1 // pred_check
      _
    $region15: #{tpu_custom_call.1} parent=1 // pred_check_branch
      %51 = sbr.rel (0) target = $region17
    $region16: #{tpu_custom_call.1} parent=1 // pred_region
      %53 = dma.done [#allocation4], 256
    $region17: #{tpu_custom_call.1} parent=1 // pred_fallthru
      _
    // Predicated region
    $region18: #{tpu_custom_call.1} parent=1 // pred_check
      _
    $region19: #{tpu_custom_call.1} parent=1 // pred_check_branch
      %55 = sbr.rel (0) target = $region21
    $region20: #{tpu_custom_call.1} parent=1 // pred_region
      %57 = dma.done [#allocation7], 2048
    $region21: #{tpu_custom_call.1} parent=1 // pred_fallthru
      _
    // Predicated region
    $region22: #{tpu_custom_call.1} parent=1 // pred_check
      _
    $region23: #{tpu_custom_call.1} parent=1 // pred_check_branch
      %59 = sbr.rel (0) target = $region25
    $region24: #{tpu_custom_call.1} parent=1 // pred_region
      %61 = dma.done [#allocation7], 32
    $region25: #{tpu_custom_call.1} parent=1 // pred_fallthru
      _
    %p62 = scmp.eq.s32.totalorder 0, 0
    // Predicated region
    $region26: #{tpu_custom_call.1} parent=1 // pred_check
      %p63 = pneg %p62
    $region27: #{tpu_custom_call.1} parent=1 // pred_check_branch
      %65 = sbr.rel (%p63) target = $region29
    $region28: #{tpu_custom_call.1} parent=1 // pred_region
      %v66 = vld [vmem:[#allocation8] sm:$0x1]
      %v67 = vld [vmem:[#allocation8 + $0x1] sm:$0x1]
      %v70 = vperm.slane %v66, 0
      %v71 = vperm.slane %v67, 0
      %74 = vst [vmem:[#allocation2] sm:$0xff] %v70
      %75 = vst [vmem:[#allocation2 + $0x8] sm:$0xff] %v70
      %76 = vst [vmem:[#allocation2 + $0x10] sm:$0xff] %v71
      %77 = vst [vmem:[#allocation2 + $0x18] sm:$0xff] %v71
    $region29: #{tpu_custom_call.1} parent=1 // pred_fallthru
      _
    %v78 = vld [vmem:[#allocation3] sm:$0xf]
    %v79 = vld [vmem:[#allocation3 + $0x4] sm:$0xf]
    %v80 = vld [vmem:[#allocation3 + $0x8] sm:$0xf]
    %v81 = vld [vmem:[#allocation3 + $0xc] sm:$0xf]
    %v82 = vld [vmem:[#allocation6] sm:$0xf]
    %v83 = vld [vmem:[#allocation6 + $0x4] sm:$0xf]
    %v84 = vld [vmem:[#allocation6 + $0x8] sm:$0xf]
    %v85 = vld [vmem:[#allocation6 + $0xc] sm:$0xf]
    %v86 = vld [vmem:[#allocation6 + $0x10] sm:$0xf]
    %v87 = vld [vmem:[#allocation6 + $0x14] sm:$0xf]
    %v88 = vld [vmem:[#allocation6 + $0x18] sm:$0xf]
    %v89 = vld [vmem:[#allocation6 + $0x1c] sm:$0xf]
    %v90 = vld [vmem:[#allocation6 + $0x20] sm:$0xf]
    %v91 = vld [vmem:[#allocation6 + $0x24] sm:$0xf]
    %v92 = vld [vmem:[#allocation6 + $0x28] sm:$0xf]
    %v93 = vld [vmem:[#allocation6 + $0x2c] sm:$0xf]
    %v94 = vld [vmem:[#allocation6 + $0x30] sm:$0xf]
    %v95 = vld [vmem:[#allocation6 + $0x34] sm:$0xf]
    %v96 = vld [vmem:[#allocation6 + $0x38] sm:$0xf]
    %v97 = vld [vmem:[#allocation6 + $0x3c] sm:$0xf]
    %v102 = vunpack.c.l.b16 %v78
    %v103 = vunpack.c.l.b16 %v79
    %v104 = vunpack.c.l.b16 %v80
    %v105 = vunpack.c.l.b16 %v81
    %v106 = vpack.c.b16 %v103, %v102
    %v107 = vpack.c.b16 %v105, %v104
    %v126 = vunpack.c.l.b16 %v82
    %v127 = vunpack.c.l.b16 %v83
    %v128 = vunpack.c.l.b16 %v84
    %v129 = vunpack.c.l.b16 %v85
    %v130 = vunpack.c.l.b16 %v86
    %v131 = vunpack.c.l.b16 %v87
    %v132 = vunpack.c.l.b16 %v88
    %v133 = vunpack.c.l.b16 %v89
    %v134 = vunpack.c.l.b16 %v90
    %v135 = vunpack.c.l.b16 %v91
    %v136 = vunpack.c.l.b16 %v92
    %v137 = vunpack.c.l.b16 %v93
    %v138 = vunpack.c.l.b16 %v94
    %v139 = vunpack.c.l.b16 %v95
    %v140 = vunpack.c.l.b16 %v96
    %v141 = vunpack.c.l.b16 %v97
    %v142 = vpack.c.b16 %v127, %v126
    %v143 = vpack.c.b16 %v129, %v128
    %v144 = vpack.c.b16 %v131, %v130
    %v145 = vpack.c.b16 %v133, %v132
    %v146 = vpack.c.b16 %v135, %v134
    %v147 = vpack.c.b16 %v137, %v136
    %v148 = vpack.c.b16 %v139, %v138
    %v149 = vpack.c.b16 %v141, %v140
    %158 = vmatpush.bf16.msra.mxu0 %v149
    %159 = vmatpush.bf16.msra.mxu0 %v148
    %160 = vmatpush.bf16.msra.mxu0 %v147
    %161 = vmatpush.bf16.msra.mxu0 %v146
    %162 = vmatpush.bf16.msra.mxu0 %v145
    %163 = vmatpush.bf16.msra.mxu0 %v144
    %164 = vmatpush.bf16.msra.mxu0 %v143
    %165 = vmatpush.bf16.msra.mxu0 %v142
    %166 = vmatmul.bf16.gmra.mxu0 %v106
    %v167 = vpop.f32.mrf.mxu0
    %v168 = vadd.f32 0.0, %v167
    %v169 = vpop.f32.mrf.mxu0
    %v170 = vadd.f32 0.0, %v169
    %171 = vmatmul.bf16.gmra.mxu0 %v107
    %v172 = vpop.f32.mrf.mxu0
    %v173 = vadd.f32 0.0, %v172
    %v174 = vpop.f32.mrf.mxu0
    %v175 = vadd.f32 0.0, %v174
    %176 = vdwg.mxu0
    %s177 = scalar_lea.vmem [#allocation6], 64
    %v178 = vld [vmem:[%s177] sm:$0xf]
    %v179 = vld [vmem:[%s177 + $0x4] sm:$0xf]
    %v180 = vld [vmem:[%s177 + $0x8] sm:$0xf]
    %v181 = vld [vmem:[%s177 + $0xc] sm:$0xf]
    %v182 = vld [vmem:[%s177 + $0x10] sm:$0xf]
    %v183 = vld [vmem:[%s177 + $0x14] sm:$0xf]
    %v184 = vld [vmem:[%s177 + $0x18] sm:$0xf]
    %v185 = vld [vmem:[%s177 + $0x1c] sm:$0xf]
    %v186 = vld [vmem:[%s177 + $0x20] sm:$0xf]
    %v187 = vld [vmem:[%s177 + $0x24] sm:$0xf]
    %v188 = vld [vmem:[%s177 + $0x28] sm:$0xf]
    %v189 = vld [vmem:[%s177 + $0x2c] sm:$0xf]
    %v190 = vld [vmem:[%s177 + $0x30] sm:$0xf]
    %v191 = vld [vmem:[%s177 + $0x34] sm:$0xf]
    %v192 = vld [vmem:[%s177 + $0x38] sm:$0xf]
    %v193 = vld [vmem:[%s177 + $0x3c] sm:$0xf]
    %v210 = vunpack.c.l.b16 %v178
    %v211 = vunpack.c.l.b16 %v179
    %v212 = vunpack.c.l.b16 %v180
    %v213 = vunpack.c.l.b16 %v181
    %v214 = vunpack.c.l.b16 %v182
    %v215 = vunpack.c.l.b16 %v183
    %v216 = vunpack.c.l.b16 %v184
    %v217 = vunpack.c.l.b16 %v185
    %v218 = vunpack.c.l.b16 %v186
    %v219 = vunpack.c.l.b16 %v187
    %v220 = vunpack.c.l.b16 %v188
    %v221 = vunpack.c.l.b16 %v189
    %v222 = vunpack.c.l.b16 %v190
    %v223 = vunpack.c.l.b16 %v191
    %v224 = vunpack.c.l.b16 %v192
    %v225 = vunpack.c.l.b16 %v193
    %v226 = vpack.c.b16 %v211, %v210
    %v227 = vpack.c.b16 %v213, %v212
    %v228 = vpack.c.b16 %v215, %v214
    %v229 = vpack.c.b16 %v217, %v216
    %v230 = vpack.c.b16 %v219, %v218
    %v231 = vpack.c.b16 %v221, %v220
    %v232 = vpack.c.b16 %v223, %v222
    %v233 = vpack.c.b16 %v225, %v224
    %242 = vmatpush.bf16.msra.mxu0 %v233
    %243 = vmatpush.bf16.msra.mxu0 %v232
    %244 = vmatpush.bf16.msra.mxu0 %v231
    %245 = vmatpush.bf16.msra.mxu0 %v230
    %246 = vmatpush.bf16.msra.mxu0 %v229
    %247 = vmatpush.bf16.msra.mxu0 %v228
    %248 = vmatpush.bf16.msra.mxu0 %v227
    %249 = vmatpush.bf16.msra.mxu0 %v226
    %250 = vmatmul.bf16.gmra.mxu0 %v106
    %v251 = vpop.f32.mrf.mxu0
    %v252 = vadd.f32 0.0, %v251
    %v253 = vpop.f32.mrf.mxu0
    %v254 = vadd.f32 0.0, %v253
    %255 = vmatmul.bf16.gmra.mxu0 %v107
    %v256 = vpop.f32.mrf.mxu0
    %v257 = vadd.f32 0.0, %v256
    %v258 = vpop.f32.mrf.mxu0
    %v259 = vadd.f32 0.0, %v258
    %260 = vdwg.mxu0
    %v261 = vld [vmem:[#allocation2] sm:$0xff]
    %v262 = vld [vmem:[#allocation2 + $0x8] sm:$0xff]
    %v263 = vsub.f32 %v168, %v257
    %v264 = vsub.f32 %v170, %v259
    %v265 = vadd.f32 %v261, %v263
    %v266 = vadd.f32 %v262, %v264
    %267 = vst [vmem:[#allocation2] sm:$0xff] %v265
    %268 = vst [vmem:[#allocation2 + $0x8] sm:$0xff] %v266
    %s269 = scalar_lea.vmem [#allocation2], 16
    %v270 = vld [vmem:[%s269] sm:$0xff]
    %v271 = vld [vmem:[%s269 + $0x8] sm:$0xff]
    %v272 = vadd.f32 %v173, %v252
    %v273 = vadd.f32 %v175, %v254
    %v274 = vadd.f32 %v270, %v272
    %v275 = vadd.f32 %v271, %v273
    %276 = vst [vmem:[%s269] sm:$0xff] %v274
    %277 = vst [vmem:[%s269 + $0x8] sm:$0xff] %v275
    // Predicated region
    $region30: #{tpu_custom_call.1} parent=1 // pred_check
      %p278 = pneg %p62
    $region31: #{tpu_custom_call.1} parent=1 // pred_check_branch
      %280 = sbr.rel (%p278) target = $region33
    $region32: #{tpu_custom_call.1} parent=1 // pred_region
      %v281 = vld [vmem:[#allocation2] sm:$0xff]
      %v282 = vld [vmem:[#allocation2 + $0x8] sm:$0xff]
      %v283 = vld [vmem:[#allocation2 + $0x10] sm:$0xff]
      %v284 = vld [vmem:[#allocation2 + $0x18] sm:$0xff]
      %285 = vst [vmem:[#allocation9] sm:$0xff] %v281
      %286 = vst [vmem:[#allocation9 + $0x8] sm:$0xff] %v282
      %287 = vst [vmem:[#allocation9 + $0x10] sm:$0xff] %v283
      %288 = vst [vmem:[#allocation9 + $0x18] sm:$0xff] %v284
    $region33: #{tpu_custom_call.1} parent=1 // pred_fallthru
      _
    // Predicated region
    $region34: #{tpu_custom_call.1} parent=1 // pred_check
      _
    $region35: #{tpu_custom_call.1} parent=1 // pred_check_branch
      %290 = sbr.rel (0) target = $region37
    $region36: #{tpu_custom_call.1} parent=1 // pred_region
      %292 = vsyncadd [#allocation5], 0
      %s293 = sshll.u32 [#allocation9], 4
      %s294 = int_to_ptr.vmem [resolvable:$true] %s293
      %s295 = sshll.u32 %s3, 4
      %s296 = int_to_ptr.hbm [resolvable:$true] %s295
      %301 = dma.vmem_to_hbm [thread:$0]  %s294, 512, %s296, [#allocation5], 128, 128, 8
    $region37: #{tpu_custom_call.1} parent=1 // pred_fallthru
      _
    // Predicated region
    $region38: #{tpu_custom_call.1} parent=1 // pred_check
      _
    $region39: #{tpu_custom_call.1} parent=1 // pred_check_branch
      %303 = sbr.rel (0) target = $region41
    $region40: #{tpu_custom_call.1} parent=1 // pred_region
      %305 = dma.done [#allocation5], 512
    $region41: #{tpu_custom_call.1} parent=1 // pred_fallthru
      _
    %306 = vsyncpa [#allocation4], 1
    %307 = vsyncpa [#allocation7], 1
    %308 = vsyncpa [#allocation5], 1

</llo_original>
